<compile_context>
chip_gen: v5e
topology: v5e:2x2
jax: 0.10.0
libtpu: 0.0.40
codegen_flags: <defaults>
</compile_context>

<pallas_src>
import functools
import math

import jax
import jax.numpy as jnp
from jax import lax
from jax.experimental import pallas as pl
from jax.experimental.pallas import tpu as pltpu


def _round_up(x, m):
    return (x + m - 1) // m * m


def _cdiv(a, b):
    return (a + b - 1) // b


def _vmem_capacity_bytes():
    """Physical VMEM per TensorCore; conservative fallback if unavailable."""
    try:
        cap = getattr(pltpu.get_tpu_info(), "vmem_capacity_bytes", None)
        if cap:
            return int(cap)
    except Exception:
        pass
    return 64 * 1024 * 1024  # v7x per-TC size: a safe lower bound everywhere.


def _ffn_kernel(x_ref, w1_ref, b1_ref, w2_ref, b2_ref, o_ref, *scratch):
    """One (token-tile, hidden-tile) grid step:
         acc += GELU(x @ W1[:, j] + b1[j]) @ W2[j, :];  finalize with + b2.
       f32 outputs accumulate directly into o_ref (no scratch)."""
    acc_ref = scratch[0] if scratch else o_ref
    j = pl.program_id(1)
    nj = pl.num_programs(1)

    # ---- Linear 1 slice (D -> th): bf16 MXU operands, f32 accumulation. ----
    h = jnp.dot(x_ref[...], w1_ref[...], preferred_element_type=jnp.float32)
    h = h + b1_ref[...]                       # (1, th) broadcasts over token rows

    # ---- Exact (erf-based) GELU, matching torch.nn.GELU() default. ----
    h = jnp.float32(0.5) * h * (jnp.float32(1.0)
                                + lax.erf(h * jnp.float32(1.0 / math.sqrt(2.0))))

    # Dropout(p=0.0) is identity -> omitted.
    # TODO(synk): training-mode dropout (p > 0) would use pltpu.prng_seed /
    # pltpu.prng_random_bits; not needed for the default p=0.0 forward pass.

    # ---- Linear 2 slice (th -> D), accumulate on the resident block. ----
    partial = jnp.dot(h.astype(jnp.bfloat16), w2_ref[...],
                      preferred_element_type=jnp.float32)

    @pl.when(j == 0)
    def _():
        acc_ref[...] = partial

    @pl.when(j > 0)
    def _():
        acc_ref[...] = acc_ref[...] + partial

    @pl.when(j == nj - 1)
    def _():
        if scratch:                            # non-f32 output: cast once at the end
            o_ref[...] = (acc_ref[...] + b2_ref[...]).astype(o_ref.dtype)
        else:                                  # f32 output: in-place finalize
            o_ref[...] = acc_ref[...] + b2_ref[...]


@functools.partial(jax.jit,
                   static_argnames=("tile_tokens", "tile_hidden", "weight_resident"))
def feed_forward(x, w1, b1, w2, b2, *, tile_tokens=512, tile_hidden=512,
                 weight_resident=None):
    """x: (B, S, D); w1: (D, H); b1: (H,); w2: (H, D); b2: (D,). Returns (B, S, D)."""
    B, S, D = x.shape
    H = w1.shape[1]
    N = B * S
    out_dtype = x.dtype
    out_itemsize = jnp.dtype(out_dtype).itemsize
    needs_scratch = jnp.dtype(out_dtype) != jnp.dtype(jnp.float32)

    # ---- Per-generation VMEM budget (v7x ~54 MiB; v5e/v6e capped at 96 MiB). ----
    vmem_cap = _vmem_capacity_bytes()
    vmem_budget = min(int(vmem_cap * 0.85), vmem_cap - 8 * 2**20, 96 * 2**20)
    vmem_budget = max(vmem_budget, 16 * 2**20)

    # ---- Token tiling: big tiles for MXU rows / per-step overhead, clamped. ----
    sub = 16  # sublane alignment that works for both f32 (8) and bf16 (16) tiles
    tm = _round_up(min(tile_tokens, _round_up(N, sub)), sub)
    if _cdiv(N, tm) < 2 and N > sub:
        # >= 2 token tiles so the "parallel" axis can shard across v7x's 2 TCs.
        tm = _round_up(_cdiv(N, 2), sub)
    N_pad = _round_up(N, tm)
    n_token_tiles = N_pad // tm

    # ---- Hidden tiling: single full-H (weight-resident) step if it fits VMEM. ----
    def _footprint(th_):
        x_buf = 2 * tm * D * 2                     # bf16 x tile, double-buffered
        w_buf = 2 * 2 * D * th_ * 2                # bf16 W1 + W2, double-buffered
        b_buf = 2 * (th_ + D) * 4                  # f32 biases, double-buffered
        o_buf = 2 * tm * D * out_itemsize          # output tile, double-buffered
        acc = tm * D * 4 if needs_scratch else 0   # f32 accumulator scratch
        return x_buf + w_buf + b_buf + o_buf + acc

    resident = weight_resident
    if resident is None:
        resident = (H <= tile_hidden) or (_footprint(H) <= vmem_budget)
    if resident:
        th, H_pad = H, H
    else:
        th = min(_round_up(tile_hidden, 256), _round_up(H, 256))
        H_pad = _round_up(H, th)
    n_hidden_tiles = H_pad // th

    # ---- Operand prep: bf16 x / weights (single cast, halves DMA bytes). ----
    x2 = x.reshape(N, D).astype(jnp.bfloat16)
    if N_pad != N:
        x2 = jnp.pad(x2, ((0, N_pad - N), (0, 0)))
    w1c = w1.astype(jnp.bfloat16)
    w2c = w2.astype(jnp.bfloat16)
    b1c = b1.astype(jnp.float32).reshape(1, H)
    b2c = b2.astype(jnp.float32).reshape(1, D)
    if H_pad != H:
        # Padded hidden columns contribute exactly 0 (b1 = 0, zero W2 rows).
        w1c = jnp.pad(w1c, ((0, 0), (0, H_pad - H)))
        b1c = jnp.pad(b1c, ((0, 0), (0, H_pad - H)))
        w2c = jnp.pad(w2c, ((0, H_pad - H), (0, 0)))

    # ---- Scheduler hint: count weight re-streaming when hidden is tiled. ----
    weight_passes = n_token_tiles if n_hidden_tiles > 1 else 1
    cost = pl.CostEstimate(
        flops=int(4 * N_pad * D * H_pad),                    # two matmuls
        transcendentals=int(N_pad * H_pad),                  # erf
        bytes_accessed=int(N_pad * D * 2                     # bf16 x
                           + N_pad * D * out_itemsize        # output
                           + weight_passes * 2 * D * H_pad * 2   # bf16 W1 + W2
                           + 4 * (H_pad + D)),               # biases
    )

    scratch_shapes = [pltpu.VMEM((tm, D), jnp.float32)] if needs_scratch else []

    out2 = pl.pallas_call(
        _ffn_kernel,
        out_shape=jax.ShapeDtypeStruct((N_pad, D), out_dtype),
        grid_spec=pltpu.PrefetchScalarGridSpec(
            num_scalar_prefetch=0,
            grid=(n_token_tiles, n_hidden_tiles),     # token axis, hidden (reduction) innermost
            in_specs=[
                pl.BlockSpec((tm, D), lambda i, j: (i, 0)),   # x tile (resident across j)
                pl.BlockSpec((D, th), lambda i, j: (0, j)),   # W1 slice (constant when resident)
                pl.BlockSpec((1, th), lambda i, j: (0, j)),   # b1 slice
                pl.BlockSpec((th, D), lambda i, j: (j, 0)),   # W2 slice (constant when resident)
                pl.BlockSpec((1, D), lambda i, j: (0, 0)),    # b2
            ],
            out_specs=pl.BlockSpec((tm, D), lambda i, j: (i, 0)),
            scratch_shapes=scratch_shapes,
        ),
        compiler_params=pltpu.CompilerParams(
            dimension_semantics=("parallel", "arbitrary"),
            vmem_limit_bytes=int(vmem_budget),
        ),
        cost_estimate=cost,
    )(x2, w1c, b1c, w2c, b2c)

    return out2[:N].reshape(B, S, D)


def _reference(x, w1, b1, w2, b2):
    xf = x.astype(jnp.float32)
    h = jnp.einsum("bsd,dh->bsh", xf, w1) + b1
    h = jax.nn.gelu(h, approximate=False)
    return jnp.einsum("bsh,hd->bsd", h, w2) + b2


def _make_params(key, D, H):
    k1, kb1, k2, kb2 = jax.random.split(key, 4)
    lim1 = 1.0 / math.sqrt(D)
    lim2 = 1.0 / math.sqrt(H)
    w1 = jax.random.uniform(k1, (D, H), jnp.float32, -lim1, lim1)
    b1 = jax.random.uniform(kb1, (H,), jnp.float32, -lim1, lim1)
    w2 = jax.random.uniform(k2, (H, D), jnp.float32, -lim2, lim2)
    b2 = jax.random.uniform(kb2, (D,), jnp.float32, -lim2, lim2)
    return w1, b1, w2, b2


if __name__ == "__main__":
    key = jax.random.PRNGKey(0)

    # ---- Case 1: tiny ViT-ish shapes, weight-resident single-step path ----
    B, S, D, H = 2, 8, 32, 64
    kx, kp, key = jax.random.split(key, 3)
    x = jax.random.normal(kx, (B, S, D), dtype=jnp.float32)
    w1, b1, w2, b2 = _make_params(kp, D, H)
    out = jax.block_until_ready(feed_forward(x, w1, b1, w2, b2))
    ref = _reference(x, w1, b1, w2, b2)
    assert out.shape == (B, S, D)
    assert jnp.allclose(out, ref, atol=3e-2, rtol=3e-2), "case 1 mismatch vs reference"

    # ---- Case 2: non-tile-aligned tokens + forced multi-step hidden reduction ----
    B, S, D, H = 2, 197, 128, 384
    kx, kp, key = jax.random.split(key, 3)
    x = jax.random.normal(kx, (B, S, D), dtype=jnp.float32)
    w1, b1, w2, b2 = _make_params(kp, D, H)
    out = jax.block_until_ready(
        feed_forward(x, w1, b1, w2, b2, tile_hidden=128, weight_resident=False))
    ref = _reference(x, w1, b1, w2, b2)
    assert out.shape == (B, S, D)
    assert jnp.allclose(out, ref, atol=3e-2, rtol=3e-2), "case 2 mismatch vs reference"

    # ---- Case 3: bf16 activations/output (exercises the f32 scratch accumulator) ----
    B, S, D, H = 2, 64, 128, 256
    kx, kp = jax.random.split(key, 2)
    x = jax.random.normal(kx, (B, S, D), dtype=jnp.bfloat16)
    w1, b1, w2, b2 = _make_params(kp, D, H)
    out = jax.block_until_ready(feed_forward(x, w1, b1, w2, b2))
    ref = _reference(x, w1, b1, w2, b2)
    assert out.shape == (B, S, D) and out.dtype == jnp.bfloat16
    assert jnp.allclose(out.astype(jnp.float32), ref, atol=5e-2, rtol=5e-2), \
        "case 3 mismatch vs reference"

    print("KERNEL_OK")
</pallas_src>

<mosaic_0001>
module attributes {stable_mosaic.version = 11 : i64} {
  func.func @_ffn_kernel(%arg0: i32, %arg1: i32, %arg2: memref<16x32xbf16, #tpu.memory_space<vmem>>, %arg3: memref<32x64xbf16, #tpu.memory_space<vmem>>, %arg4: memref<1x64xf32, #tpu.memory_space<vmem>>, %arg5: memref<64x32xbf16, #tpu.memory_space<vmem>>, %arg6: memref<1x32xf32, #tpu.memory_space<vmem>>, %arg7: memref<16x32xf32, #tpu.memory_space<vmem>>) attributes {dimension_semantics = [#tpu.dimension_semantics<parallel>, #tpu.dimension_semantics<arbitrary>], iteration_bounds = array<i64: 1, 1>, scalar_prefetch = 0 : i64, scratch_operands = 0 : i64, tpu.core_type = #tpu.core_type<tc>, window_params = [{transform_indices = @transform_0, window_bounds = array<i64: 16, 32>}, {transform_indices = @transform_1, window_bounds = array<i64: 32, 64>}, {transform_indices = @transform_2, window_bounds = array<i64: 1, 64>}, {transform_indices = @transform_3, window_bounds = array<i64: 64, 32>}, {pipeline_mode = #tpu.pipeline_mode<synchronous>, transform_indices = @transform_4, window_bounds = array<i64: 1, 32>}, {transform_indices = @transform_5, window_bounds = array<i64: 16, 32>}]} {
    %c0 = arith.constant 0 : index
    %c0_0 = arith.constant 0 : index
    %0 = vector.load %arg2[%c0, %c0_0] : memref<16x32xbf16, #tpu.memory_space<vmem>>, vector<16x32xbf16>
    %c0_1 = arith.constant 0 : index
    %c0_2 = arith.constant 0 : index
    %1 = vector.load %arg3[%c0_1, %c0_2] : memref<32x64xbf16, #tpu.memory_space<vmem>>, vector<32x64xbf16>
    %cst = arith.constant dense<0.000000e+00> : vector<16x64xf32>
    %2 = tpu.matmul %0, %1, %cst {dimension_numbers = #tpu.dot_dimension_numbers<[1], [0], [0], [1], [0, 0, 1, 1], [], []>} : vector<16x32xbf16>, vector<32x64xbf16>, vector<16x64xf32> -> vector<16x64xf32>
    %c0_3 = arith.constant 0 : index
    %c0_4 = arith.constant 0 : index
    %3 = vector.load %arg4[%c0_3, %c0_4] : memref<1x64xf32, #tpu.memory_space<vmem>>, vector<1x64xf32>
    %4 = vector.broadcast %3 : vector<1x64xf32> to vector<16x64xf32>
    %5 = arith.addf %2, %4 : vector<16x64xf32>
    %cst_5 = arith.constant 5.000000e-01 : f32
    %6 = vector.broadcast %cst_5 : f32 to vector<16x64xf32>
    %7 = arith.mulf %6, %5 : vector<16x64xf32>
    %cst_6 = arith.constant 0.707106769 : f32
    %8 = vector.broadcast %cst_6 : f32 to vector<16x64xf32>
    %9 = arith.mulf %5, %8 : vector<16x64xf32>
    %10 = math.erf %9 : vector<16x64xf32>
    %cst_7 = arith.constant 1.000000e+00 : f32
    %11 = vector.broadcast %cst_7 : f32 to vector<16x64xf32>
    %12 = arith.addf %11, %10 : vector<16x64xf32>
    %13 = arith.mulf %7, %12 : vector<16x64xf32>
    %14 = arith.truncf %13 : vector<16x64xf32> to vector<16x64xbf16>
    %c0_8 = arith.constant 0 : index
    %c0_9 = arith.constant 0 : index
    %15 = vector.load %arg5[%c0_8, %c0_9] : memref<64x32xbf16, #tpu.memory_space<vmem>>, vector<64x32xbf16>
    %cst_10 = arith.constant dense<0.000000e+00> : vector<16x32xf32>
    %16 = tpu.matmul %14, %15, %cst_10 {dimension_numbers = #tpu.dot_dimension_numbers<[1], [0], [0], [1], [0, 0, 1, 1], [], []>} : vector<16x64xbf16>, vector<64x32xbf16>, vector<16x32xf32> -> vector<16x32xf32>
    %c0_i32 = arith.constant 0 : i32
    %17 = arith.cmpi eq, %arg1, %c0_i32 : i32
    %18 = arith.extui %17 : i1 to i32
    %c0_i32_11 = arith.constant 0 : i32
    %19 = arith.cmpi ne, %18, %c0_i32_11 : i32
    scf.if %19 {
      %c0_16 = arith.constant 0 : index
      %c0_17 = arith.constant 0 : index
      %26 = vector.load %arg7[%c0_16, %c0_17] : memref<16x32xf32, #tpu.memory_space<vmem>>, vector<16x32xf32>
      tpu.vector_store %arg7[%c0_16, %c0_17], %16 {strides = array<i32>} : memref<16x32xf32, #tpu.memory_space<vmem>>, vector<16x32xf32>,
    } else {
    }
    %c0_i32_12 = arith.constant 0 : i32
    %20 = arith.cmpi sgt, %arg1, %c0_i32_12 : i32
    %21 = arith.extui %20 : i1 to i32
    %c0_i32_13 = arith.constant 0 : i32
    %22 = arith.cmpi ne, %21, %c0_i32_13 : i32
    scf.if %22 {
      %c0_16 = arith.constant 0 : index
      %c0_17 = arith.constant 0 : index
      %26 = vector.load %arg7[%c0_16, %c0_17] : memref<16x32xf32, #tpu.memory_space<vmem>>, vector<16x32xf32>
      %27 = arith.addf %26, %16 : vector<16x32xf32>
      %c0_18 = arith.constant 0 : index
      %c0_19 = arith.constant 0 : index
      %28 = vector.load %arg7[%c0_18, %c0_19] : memref<16x32xf32, #tpu.memory_space<vmem>>, vector<16x32xf32>
      tpu.vector_store %arg7[%c0_18, %c0_19], %27 {strides = array<i32>} : memref<16x32xf32, #tpu.memory_space<vmem>>, vector<16x32xf32>,
    } else {
    }
    %c0_i32_14 = arith.constant 0 : i32
    %23 = arith.cmpi eq, %arg1, %c0_i32_14 : i32
    %24 = arith.extui %23 : i1 to i32
    %c0_i32_15 = arith.constant 0 : i32
    %25 = arith.cmpi ne, %24, %c0_i32_15 : i32
    scf.if %25 {
      %c0_16 = arith.constant 0 : index
      %c0_17 = arith.constant 0 : index
      %26 = vector.load %arg7[%c0_16, %c0_17] : memref<16x32xf32, #tpu.memory_space<vmem>>, vector<16x32xf32>
      %c0_18 = arith.constant 0 : index
      %c0_19 = arith.constant 0 : index
      %27 = vector.load %arg6[%c0_18, %c0_19] : memref<1x32xf32, #tpu.memory_space<vmem>>, vector<1x32xf32>
      %28 = vector.broadcast %27 : vector<1x32xf32> to vector<16x32xf32>
      %29 = arith.addf %26, %28 : vector<16x32xf32>
      %c0_20 = arith.constant 0 : index
      %c0_21 = arith.constant 0 : index
      %30 = vector.load %arg7[%c0_20, %c0_21] : memref<16x32xf32, #tpu.memory_space<vmem>>, vector<16x32xf32>
      tpu.vector_store %arg7[%c0_20, %c0_21], %29 {strides = array<i32>} : memref<16x32xf32, #tpu.memory_space<vmem>>, vector<16x32xf32>,
    } else {
    }
    return
  }
  func.func @transform_0(%arg0: i32, %arg1: i32) -> (i32, i32) {
    %c0_i32 = arith.constant 0 : i32
    %c0_i32_0 = arith.constant 0 : i32
    return %arg0, %c0_i32 : i32, i32
  }
  func.func @transform_1(%arg0: i32, %arg1: i32) -> (i32, i32) {
    %c0_i32 = arith.constant 0 : i32
    %c0_i32_0 = arith.constant 0 : i32
    return %c0_i32, %arg1 : i32, i32
  }
  func.func @transform_2(%arg0: i32, %arg1: i32) -> (i32, i32) {
    %c0_i32 = arith.constant 0 : i32
    %c0_i32_0 = arith.constant 0 : i32
    return %c0_i32, %arg1 : i32, i32
  }
  func.func @transform_3(%arg0: i32, %arg1: i32) -> (i32, i32) {
    %c0_i32 = arith.constant 0 : i32
    %c0_i32_0 = arith.constant 0 : i32
    return %arg1, %c0_i32 : i32, i32
  }
  func.func @transform_4(%arg0: i32, %arg1: i32) -> (i32, i32) {
    %c0_i32 = arith.constant 0 : i32
    %c0_i32_0 = arith.constant 0 : i32
    %c0_i32_1 = arith.constant 0 : i32
    return %c0_i32, %c0_i32_0 : i32, i32
  }
  func.func @transform_5(%arg0: i32, %arg1: i32) -> (i32, i32) {
    %c0_i32 = arith.constant 0 : i32
    %c0_i32_0 = arith.constant 0 : i32
    return %arg0, %c0_i32 : i32, i32
  }
}

</mosaic_0001>

<llo_original>
// kernel: feed_forward.1
$region0: #{feed_forward.1}
  #allocation0 [shape = 'u32[]', space=smem, size = 0x4, offset = 0x4, fixed_abs, tag = 'smem constant byte address 0x4 - core index']
  #allocation1 [shape = 'u32[72,128]{1,0:T(1,128)}', space=vmem, size = 0x9000, scoped, tag = 'internal scratch']
  %s0 = inlined_call_operand.vmem [shape: bf16[16,32], index: 0, kind: input, shape index: {}]
  %s1 = inlined_call_operand.vmem [shape: bf16[32,64], index: 1, kind: input, shape index: {}]
  %s2 = inlined_call_operand.vmem [shape: f32[1,64], index: 2, kind: input, shape index: {}]
  %s3 = inlined_call_operand.vmem [shape: bf16[64,32], index: 3, kind: input, shape index: {}]
  %s4 = inlined_call_operand.vmem [shape: f32[1,32], index: 4, kind: input, shape index: {}]
  %s5 = inlined_call_operand.hbm [shape: f32[16,32], index: 5, kind: output, shape index: {}]
  %s6 = sld [smem:[#allocation0]]
  $region42: #{feed_forward.1} parent=0
    _
  %s8 = ssub.s32 1, %s6
  %s9 = scalar_select 0, %s8, %s6
  $region1: #{feed_forward.1} parent=0
    #allocation2 [shape = 'u8[8192]{0}', space=vmem, size = 0x2000, scoped, tag = 'output window, operand 0, single buffered']
    #allocation3 [shape = 's32[1]{0}', space=sflag, size = 0x4, scoped, tag = 'scoped memory for feed_forward.1']
    %10 = vsyncpa [#allocation3], 0
    // Predicated region
    $region2: #{feed_forward.1} parent=1 // pred_check
      _
    $region3: #{feed_forward.1} parent=1 // pred_check_branch
      %12 = sbr.rel (0) target = $region5
    $region4: #{feed_forward.1} parent=1 // pred_region
      _
    $region5: #{feed_forward.1} parent=1 // pred_fallthru
      _
    // Predicated region
    $region6: #{feed_forward.1} parent=1 // pred_check
      _
    $region7: #{feed_forward.1} parent=1 // pred_check_branch
      %14 = sbr.rel (0) target = $region9
    $region8: #{feed_forward.1} parent=1 // pred_region
      _
    $region9: #{feed_forward.1} parent=1 // pred_fallthru
      _
    // Predicated region
    $region10: #{feed_forward.1} parent=1 // pred_check
      _
    $region11: #{feed_forward.1} parent=1 // pred_check_branch
      %16 = sbr.rel (0) target = $region13
    $region12: #{feed_forward.1} parent=1 // pred_region
      _
    $region13: #{feed_forward.1} parent=1 // pred_fallthru
      _
    // Predicated region
    $region14: #{feed_forward.1} parent=1 // pred_check
      _
    $region15: #{feed_forward.1} parent=1 // pred_check_branch
      %18 = sbr.rel (0) target = $region17
    $region16: #{feed_forward.1} parent=1 // pred_region
      _
    $region17: #{feed_forward.1} parent=1 // pred_fallthru
      _
    // Predicated region
    $region18: #{feed_forward.1} parent=1 // pred_check
      _
    $region19: #{feed_forward.1} parent=1 // pred_check_branch
      %20 = sbr.rel (0) target = $region21
    $region20: #{feed_forward.1} parent=1 // pred_region
      _
    $region21: #{feed_forward.1} parent=1 // pred_fallthru
      _
    %v22 = vld [vmem:[%s0] sm:$0xf]
    %v23 = vld [vmem:[%s0 + $0x4] sm:$0xf]
    %v24 = vld [vmem:[%s1] sm:$0xf]
    %v25 = vld [vmem:[%s1 + $0x4] sm:$0xf]
    %v26 = vld [vmem:[%s1 + $0x8] sm:$0xf]
    %v27 = vld [vmem:[%s1 + $0xc] sm:$0xf]
    %v28 = vld [vmem:[%s2] sm:$0x1]
    %v30 = vperm.slane %v28, 0
    %v34 = vunpack.c.l.b16 %v22
    %v35 = vunpack.c.l.b16 %v23
    %v36 = vpack.c.b16 %v35, %v34
    %v41 = vunpack.c.l.b16 %v24
    %v42 = vunpack.c.l.b16 %v25
    %v43 = vunpack.c.l.b16 %v26
    %v44 = vunpack.c.l.b16 %v27
    %v45 = vpack.c.b16 %v42, %v41
    %v46 = vpack.c.b16 %v44, %v43
    %vm49 = vcmask 261120
    %v51 = vsel %vm49, %v36, 0
    %53 = vmatpush.bf16.msra.mxu0 0
    %54 = vmatpush.bf16.msra.mxu0 0
    %55 = vmatpush.bf16.msra.mxu0 0
    %56 = vmatpush.bf16.msra.mxu0 0
    %57 = vmatpush.bf16.msra.mxu0 0
    %58 = vmatpush.bf16.msra.mxu0 0
    %59 = vmatpush.bf16.msra.mxu0 %v46
    %60 = vmatpush.bf16.msra.mxu0 %v45
    %61 = vmatmul.bf16.gmra.mxu0 %v51
    %v62 = vpop.f32.mrf.mxu0
    %v63 = vadd.f32 %v30, %v62
    %v64 = vpop.f32.mrf.mxu0
    %v65 = vadd.f32 %v30, %v64
    %66 = vdwg.mxu0
    %v67 = vmul.f32 %v63, 0.5
    %v68 = vmul.f32 %v65, 0.5
    %v69 = vmul.f32 %v63, 0.70710677
    %v70 = vmul.f32 %v65, 0.70710677
    %v71 = vmul.f32 %v69, %v69
    %v72 = vmin.f32 16.0, %v71
    %v73 = vmul.f32 %v72, 2.1237322e-06
    %v74 = vadd.f32 %v73, 0.00028619796
    %v75 = vmul.f32 %v72, %v74
    %v76 = vadd.f32 %v75, 0.0036580483
    %v77 = vmul.f32 %v72, %v76
    %v78 = vadd.f32 %v77, 0.05243302
    %v79 = vmul.f32 %v72, %v78
    %v80 = vadd.f32 %v79, 0.18741608
    %v81 = vmul.f32 %v72, %v80
    %v82 = vadd.f32 %v81, 1.1283791
    %v83 = vmul.f32 %v69, %v82
    %v84 = vmul.f32 %v72, 3.8918573e-05
    %v85 = vadd.f32 %v84, 0.001143296
    %v86 = vmul.f32 %v72, %v85
    %v87 = vadd.f32 %v86, 0.014752088
    %v88 = vmul.f32 %v72, %v87
    %v89 = vadd.f32 %v88, 0.112945676
    %v90 = vmul.f32 %v72, %v89
    %v91 = vadd.f32 %v90, 0.4994258
    %v92 = vmul.f32 %v72, %v91
    %v93 = vadd.f32 %v92, 1.0
    %v94 = vrcp.pop %v93
    %v95 = vmul.f32 %v93, %v94
    %v96 = vsub.f32 1.0, %v95
    %v97 = vmul.f32 %v94, %v96
    %v98 = vadd.f32 %v94, %v97
    %vm99 = vweird.f32 %v93
    %vm100 = vweird.f32 %v94
    %vm101 = vmor %vm99, %vm100
    %v102 = vsel %vm101, %v94, %v98
    %v103 = vand.u32 2147483647, %v93
    %vm104 = vcmp.eq.f32.partialorder %v103, 8.507059e+37
    %v105 = vand.u32 %v93, 2147483648
    %v106 = vor.u32 1.1754944e-38, %v105
    %v107 = vsel %vm104, %v106, %v102
    %v108 = vmul.f32 %v83, %v107
    %v109 = vmin.f32 %v108, 1.0
    %v110 = vmax.f32 %v109, -1.0
    %v111 = vmul.f32 %v70, %v70
    %v112 = vmin.f32 16.0, %v111
    %v113 = vmul.f32 %v112, 2.1237322e-06
    %v114 = vadd.f32 %v113, 0.00028619796
    %v115 = vmul.f32 %v112, %v114
    %v116 = vadd.f32 %v115, 0.0036580483
    %v117 = vmul.f32 %v112, %v116
    %v118 = vadd.f32 %v117, 0.05243302
    %v119 = vmul.f32 %v112, %v118
    %v120 = vadd.f32 %v119, 0.18741608
    %v121 = vmul.f32 %v112, %v120
    %v122 = vadd.f32 %v121, 1.1283791
    %v123 = vmul.f32 %v70, %v122
    %v124 = vmul.f32 %v112, 3.8918573e-05
    %v125 = vadd.f32 %v124, 0.001143296
    %v126 = vmul.f32 %v112, %v125
    %v127 = vadd.f32 %v126, 0.014752088
    %v128 = vmul.f32 %v112, %v127
    %v129 = vadd.f32 %v128, 0.112945676
    %v130 = vmul.f32 %v112, %v129
    %v131 = vadd.f32 %v130, 0.4994258
    %v132 = vmul.f32 %v112, %v131
    %v133 = vadd.f32 %v132, 1.0
    %v134 = vrcp.pop %v133
    %v135 = vmul.f32 %v133, %v134
    %v136 = vsub.f32 1.0, %v135
    %v137 = vmul.f32 %v134, %v136
    %v138 = vadd.f32 %v134, %v137
    %vm139 = vweird.f32 %v133
    %vm140 = vweird.f32 %v134
    %vm141 = vmor %vm139, %vm140
    %v142 = vsel %vm141, %v134, %v138
    %v143 = vand.u32 2147483647, %v133
    %vm144 = vcmp.eq.f32.partialorder %v143, 8.507059e+37
    %v145 = vand.u32 %v133, 2147483648
    %v146 = vor.u32 1.1754944e-38, %v145
    %v147 = vsel %vm144, %v146, %v142
    %v148 = vmul.f32 %v123, %v147
    %v149 = vmin.f32 %v148, 1.0
    %v150 = vmax.f32 %v149, -1.0
    %v151 = vadd.f32 %v110, 1.0
    %v152 = vadd.f32 %v150, 1.0
    %v153 = vmul.f32 %v67, %v151
    %v154 = vmul.f32 %v68, %v152
    %v155 = vpack.c.bf16 %v154, %v153
    %v156 = vld [vmem:[%s3] sm:$0xf]
    %v157 = vld [vmem:[%s3 + $0x4] sm:$0xf]
    %v158 = vld [vmem:[%s3 + $0x8] sm:$0xf]
    %v159 = vld [vmem:[%s3 + $0xc] sm:$0xf]
    %v160 = vld [vmem:[%s3 + $0x10] sm:$0xf]
    %v161 = vld [vmem:[%s3 + $0x14] sm:$0xf]
    %v162 = vld [vmem:[%s3 + $0x18] sm:$0xf]
    %v163 = vld [vmem:[%s3 + $0x1c] sm:$0xf]
    %v172 = vunpack.c.l.b16 %v156
    %v173 = vunpack.c.l.b16 %v157
    %v174 = vunpack.c.l.b16 %v158
    %v175 = vunpack.c.l.b16 %v159
    %v176 = vunpack.c.l.b16 %v160
    %v177 = vunpack.c.l.b16 %v161
    %v178 = vunpack.c.l.b16 %v162
    %v179 = vunpack.c.l.b16 %v163
    %v180 = vpack.c.b16 %v173, %v172
    %v181 = vpack.c.b16 %v175, %v174
    %v182 = vpack.c.b16 %v177, %v176
    %v183 = vpack.c.b16 %v179, %v178
    %vm188 = vcmask 523264
    %v190 = vsel %vm188, %v155, 0
    %192 = vmatpush.bf16.msra.mxu0 0
    %193 = vmatpush.bf16.msra.mxu0 0
    %194 = vmatpush.bf16.msra.mxu0 0
    %195 = vmatpush.bf16.msra.mxu0 0
    %196 = vmatpush.bf16.msra.mxu0 %v183
    %197 = vmatpush.bf16.msra.mxu0 %v182
    %198 = vmatpush.bf16.msra.mxu0 %v181
    %199 = vmatpush.bf16.msra.mxu0 %v180
    %200 = vmatmul.bf16.gmra.mxu0 %v190
    %v201 = vpop.f32.mrf.mxu0
    %v202 = vadd.f32 0.0, %v201
    %v203 = vpop.f32.mrf.mxu0
    %v204 = vadd.f32 0.0, %v203
    %205 = vdwg.mxu0
    %p206 = scmp.eq.s32.totalorder 0, 0
    // Predicated region
    $region22: #{feed_forward.1} parent=1 // pred_check
      %p207 = pneg %p206
    $region23: #{feed_forward.1} parent=1 // pred_check_branch
      %209 = sbr.rel (%p207) target = $region25
    $region24: #{feed_forward.1} parent=1 // pred_region
      %210 = vst.msk [vmem:[#allocation2] sm:$0xff] %vm49, %v202
      %211 = vst.msk [vmem:[#allocation2 + $0x8] sm:$0xff] %vm49, %v204
    $region25: #{feed_forward.1} parent=1 // pred_fallthru
      _
    %p212 = scmp.gt.s32.totalorder 0, 0
    // Predicated region
    $region26: #{feed_forward.1} parent=1 // pred_check
      %p213 = pneg %p212
    $region27: #{feed_forward.1} parent=1 // pred_check_branch
      %215 = sbr.rel (%p213) target = $region29
    $region28: #{feed_forward.1} parent=1 // pred_region
      %v216 = vld [vmem:[#allocation2] sm:$0xff]
      %v217 = vld [vmem:[#allocation2 + $0x8] sm:$0xff]
      %v218 = vadd.f32 %v216, %v202
      %v219 = vadd.f32 %v217, %v204
      %220 = vst.msk [vmem:[#allocation2] sm:$0xff] %vm49, %v218
      %221 = vst.msk [vmem:[#allocation2 + $0x8] sm:$0xff] %vm49, %v219
    $region29: #{feed_forward.1} parent=1 // pred_fallthru
      _
    // Predicated region
    $region30: #{feed_forward.1} parent=1 // pred_check
      %p222 = pneg %p206
    $region31: #{feed_forward.1} parent=1 // pred_check_branch
      %224 = sbr.rel (%p222) target = $region33
    $region32: #{feed_forward.1} parent=1 // pred_region
      %v225 = vld [vmem:[#allocation2] sm:$0xff]
      %v226 = vld [vmem:[#allocation2 + $0x8] sm:$0xff]
      %v227 = vld [vmem:[%s4] sm:$0x1]
      %v229 = vperm.slane %v227, 0
      %v231 = vadd.f32 %v225, %v229
      %v232 = vadd.f32 %v226, %v229
      %233 = vst.msk [vmem:[#allocation2] sm:$0xff] %vm49, %v231
      %234 = vst.msk [vmem:[#allocation2 + $0x8] sm:$0xff] %vm49, %v232
    $region33: #{feed_forward.1} parent=1 // pred_fallthru
      _
    // Predicated region
    $region34: #{feed_forward.1} parent=1 // pred_check
      _
    $region35: #{feed_forward.1} parent=1 // pred_check_branch
      %236 = sbr.rel (0) target = $region37
    $region36: #{feed_forward.1} parent=1 // pred_region
      %238 = vsyncadd [#allocation3], 0
      %s239 = sshll.u32 [#allocation2], 4
      %s240 = int_to_ptr.vmem [resolvable:$true] %s239
      %s241 = sshll.u32 %s5, 4
      %s242 = int_to_ptr.hbm [resolvable:$true] %s241
      %247 = dma.vmem_to_hbm [thread:$0]  %s240, 256, %s242, [#allocation3], 128, 128, 8
    $region37: #{feed_forward.1} parent=1 // pred_fallthru
      _
    // Predicated region
    $region38: #{feed_forward.1} parent=1 // pred_check
      _
    $region39: #{feed_forward.1} parent=1 // pred_check_branch
      %249 = sbr.rel (0) target = $region41
    $region40: #{feed_forward.1} parent=1 // pred_region
      %251 = dma.done [#allocation3], 256
    $region41: #{feed_forward.1} parent=1 // pred_fallthru
      _
    %252 = vsyncpa [#allocation3], 1

</llo_original>
